<compile_context>
chip_gen: v5e
topology: v5e:2x2
jax: 0.10.0
libtpu: 0.0.40
codegen_flags: <defaults>
</compile_context>

<pallas_src>
import functools

import jax
import jax.numpy as jnp
from jax import lax
from jax.experimental import pallas as pl
from jax.experimental.pallas import tpu as pltpu

EPS = 1e-4


def _vmem_budget():
    """Generation-aware scoped-VMEM limit and per-x-block byte budget."""
    try:
        cap = int(pltpu.get_tpu_info().vmem_capacity_bytes)
    except Exception:
        cap = 64 * 1024 * 1024                                # safe lower bound (v7x)
    vmem_limit = min((cap * 3) // 4, 96 * 1024 * 1024)        # 96 MiB v5e/v6e, 48 MiB v7x
    block_budget = min(vmem_limit // 12, 8 * 1024 * 1024)     # 8 MiB v5e/v6e, 4 MiB v7x
    return vmem_limit, block_budget


def _pick_tile(dim, target, align):
    """Largest divisor of `dim` that is <= target and a multiple of align, else dim."""
    if dim <= target or dim <= align:
        return dim
    t = (min(target, dim) // align) * align
    while t >= align:
        if dim % t == 0:
            return t
        t -= align
    # TODO(synk): ragged dims with no aligned divisor fall back to the full extent
    # (may exceed the block budget for pathological shapes).
    return dim


# ---------------------------------------------------------------------------
# Fused single-pass kernel: stats + normalize + conditional affine.  Used when
# the full (N, tc, S) slab fits the block budget (resident in VMEM).
# ---------------------------------------------------------------------------
def _fused_kernel(inv_cnt, x_ref, gb_ref, out_ref):
    x = x_ref[...].astype(jnp.float32)                                # (N, TC, S)
    ssum = jnp.sum(jnp.sum(x, axis=2, keepdims=True), axis=0, keepdims=True)
    mean = ssum * inv_cnt                                             # (1, TC, 1)
    d = x - mean                                                      # centered -> stable variance
    var = jnp.sum(jnp.sum(d * d, axis=2, keepdims=True), axis=0, keepdims=True) * inv_cnt
    inv_std = lax.rsqrt(var + EPS)                                    # (1, TC, 1)
    gb = gb_ref[...]                                                  # (N, TC, 2) f32
    gain = gb[:, :, :1]                                               # (N, TC, 1)
    bias = gb[:, :, 1:]                                               # (N, TC, 1)
    out_ref[...] = (d * (gain * inv_std) + bias).astype(out_ref.dtype)


# ---------------------------------------------------------------------------
# Two-pass fallback (activation too large for a resident slab).
# ---------------------------------------------------------------------------
def _stats_kernel(x_ref, sum_ref, sq_ref):
    # sum_ref / sq_ref: (1, TC, 1), resident across the spatial (reduction) axis.
    @pl.when(pl.program_id(1) == 0)
    def _():
        sum_ref[...] = jnp.zeros_like(sum_ref)
        sq_ref[...] = jnp.zeros_like(sq_ref)

    x = x_ref[...].astype(jnp.float32)
    sum_ref[...] += jnp.sum(jnp.sum(x, axis=2, keepdims=True), axis=0, keepdims=True)
    sq_ref[...] += jnp.sum(jnp.sum(x * x, axis=2, keepdims=True), axis=0, keepdims=True)


def _apply_kernel(inv_cnt, x_ref, sum_ref, sq_ref, gb_ref, out_ref):
    # Scale/shift derived in-kernel from the raw stats (no XLA glue between calls).
    mean = sum_ref[...] * inv_cnt                                     # (1, TC, 1)
    # NOTE: uncentered variance (clamped); fused path uses the centered form.
    var = jnp.maximum(sq_ref[...] * inv_cnt - mean * mean, 0.0)
    inv_std = lax.rsqrt(var + EPS)                                    # (1, TC, 1)
    gb = gb_ref[...]                                                  # (N, TC, 2)
    gain = gb[:, :, :1]
    bias = gb[:, :, 1:]
    scale = gain * inv_std                                            # (N, TC, 1)
    shift = bias - mean * scale                                       # (N, TC, 1)
    x = x_ref[...].astype(jnp.float32)                                # (N, TC, TS)
    out_ref[...] = (x * scale + shift).astype(out_ref.dtype)


@jax.jit
def conditional_batchnorm2d(x_nchw, y, embed0, embed1):
    """x_nchw: (N, C, H, W); y: (N,) int32 class ids; embed0/embed1: (num_classes, C)."""
    n, c, h, w = x_nchw.shape
    s = h * w
    x = x_nchw.reshape(n, c, s)                       # free view: NCHW -> (N, C, HW)
    itemsize = jnp.dtype(x.dtype).itemsize
    vmem_limit, block_budget = _vmem_budget()
    inv_cnt = 1.0 / float(n * s)

    # Conditional gain/bias (tiny embedding gather, stays in XLA) packed into a
    # single (N, C, 2) side input -> one small DMA per channel tile.
    gain = 1.0 + jnp.take(embed0, y, axis=0).astype(jnp.float32)      # (N, C)
    bias = jnp.take(embed1, y, axis=0).astype(jnp.float32)            # (N, C)
    gb = jnp.stack([gain, bias], axis=-1)                             # (N, C, 2)

    # Channel tiling: tc must divide C and be a multiple of 8 (or the full C).
    min_tc = 8 if (c % 8 == 0) else c

    # ---- fused single-pass path: whole (N, tc, S) slab resident in VMEM ------
    if n * min_tc * s * itemsize <= block_budget:
        max_tc = max(min_tc, block_budget // max(1, n * s * itemsize))
        tc_target = max(8, min(max_tc, c // 2 if c >= 16 else c))     # >=2 blocks -> megacore
        tc = _pick_tile(c, tc_target, 8)
        x_spec = pl.BlockSpec((n, tc, s), lambda ci: (0, ci, 0))
        gb_spec = pl.BlockSpec((n, tc, 2), lambda ci: (0, ci, 0))
        out = pl.pallas_call(
            functools.partial(_fused_kernel, inv_cnt),
            grid=(c // tc,),
            in_specs=[x_spec, gb_spec],
            out_specs=x_spec,
            out_shape=jax.ShapeDtypeStruct((n, c, s), x.dtype),
            compiler_params=pltpu.CompilerParams(
                dimension_semantics=("parallel",),
                vmem_limit_bytes=vmem_limit),
        )(x, gb)
        return out.reshape(n, c, h, w)

    # ---- two-pass fallback ----------------------------------------------------
    ts_target = block_budget // max(1, n * min_tc * itemsize)
    ts = _pick_tile(s, max(128, ts_target), 128)                      # lane (spatial) tile
    max_tc = max(min_tc, block_budget // max(1, n * ts * itemsize))
    tc_target = max(8, min(max_tc, c // 2 if c >= 16 else c))
    tc = _pick_tile(c, tc_target, 8)                                  # sublane (channel) tile
    grid = (c // tc, s // ts)

    x_spec = pl.BlockSpec((n, tc, ts), lambda ci, si: (0, ci, si))
    stat_spec = pl.BlockSpec((1, tc, 1), lambda ci, si: (0, ci, 0))
    gb_spec = pl.BlockSpec((n, tc, 2), lambda ci, si: (0, ci, 0))

    # pass 1: per-channel sum / sum-of-squares over (N, H*W)
    ssum, ssq = pl.pallas_call(
        _stats_kernel,
        grid=grid,
        in_specs=[x_spec],
        out_specs=[stat_spec, stat_spec],
        out_shape=[jax.ShapeDtypeStruct((1, c, 1), jnp.float32),
                   jax.ShapeDtypeStruct((1, c, 1), jnp.float32)],
        compiler_params=pltpu.CompilerParams(
            dimension_semantics=("parallel", "arbitrary"),
            vmem_limit_bytes=vmem_limit),
    )(x)

    # pass 2: out = x * scale + shift (scale/shift derived in-kernel)
    out = pl.pallas_call(
        functools.partial(_apply_kernel, inv_cnt),
        grid=grid,
        in_specs=[x_spec, stat_spec, stat_spec, gb_spec],
        out_specs=x_spec,
        out_shape=jax.ShapeDtypeStruct((n, c, s), x.dtype),
        compiler_params=pltpu.CompilerParams(
            dimension_semantics=("parallel", "parallel"),
            vmem_limit_bytes=vmem_limit),
    )(x, ssum, ssq, gb)

    return out.reshape(n, c, h, w)                    # free view back to NCHW


def _reference(x_nchw, y, embed0, embed1):
    # Pure-JAX reference of the PyTorch forward (training-mode BN, biased var).
    mean = jnp.mean(x_nchw, axis=(0, 2, 3), keepdims=True)
    var = jnp.mean((x_nchw - mean) ** 2, axis=(0, 2, 3), keepdims=True)
    x_hat = (x_nchw - mean) / jnp.sqrt(var + EPS)
    gain = (1.0 + jnp.take(embed0, y, axis=0))[:, :, None, None]
    bias = jnp.take(embed1, y, axis=0)[:, :, None, None]
    return x_hat * gain + bias


if __name__ == "__main__":
    key = jax.random.PRNGKey(0)
    k_x, k_e0, k_e1, k_y = jax.random.split(key, 4)

    num_classes = 10
    N, C, H, W = 2, 4, 16, 16

    x = jax.random.normal(k_x, (N, C, H, W), dtype=jnp.float32)
    y = jax.random.randint(k_y, (N,), 0, num_classes, dtype=jnp.int32)
    embed0 = jax.random.normal(k_e0, (num_classes, C), dtype=jnp.float32)
    embed1 = jax.random.normal(k_e1, (num_classes, C), dtype=jnp.float32)

    out = conditional_batchnorm2d(x, y, embed0, embed1)
    out = jax.block_until_ready(out)

    ref = _reference(x, y, embed0, embed1)
    assert out.shape == (N, C, H, W)
    assert jnp.allclose(out, ref, atol=1e-4, rtol=1e-4), "mismatch vs reference"

    print("KERNEL_OK")
</pallas_src>

<mosaic_0001>
module attributes {stable_mosaic.version = 11 : i64} {
  func.func @_fused_kernel(%arg0: i32, %arg1: memref<2x4x256xf32, #tpu.memory_space<vmem>>, %arg2: memref<2x4x2xf32, #tpu.memory_space<vmem>>, %arg3: memref<2x4x256xf32, #tpu.memory_space<vmem>>) attributes {dimension_semantics = [#tpu.dimension_semantics<parallel>], iteration_bounds = array<i64: 1>, scalar_prefetch = 0 : i64, scratch_operands = 0 : i64, tpu.core_type = #tpu.core_type<tc>, window_params = [{transform_indices = @transform_0, window_bounds = array<i64: 2, 4, 256>}, {transform_indices = @transform_1, window_bounds = array<i64: 2, 4, 2>}, {transform_indices = @transform_2, window_bounds = array<i64: 2, 4, 256>}]} {
    %c0 = arith.constant 0 : index
    %c0_0 = arith.constant 0 : index
    %c0_1 = arith.constant 0 : index
    %0 = vector.load %arg1[%c0, %c0_0, %c0_1] : memref<2x4x256xf32, #tpu.memory_space<vmem>>, vector<2x4x256xf32>
    %cst = arith.constant dense<0.000000e+00> : vector<2x4xf32>
    %1 = vector.multi_reduction <add>, %0, %cst [2] : vector<2x4x256xf32> to vector<2x4xf32>
    %2 = vector.shape_cast %1 : vector<2x4xf32> to vector<2x4x1xf32>
    %cst_2 = arith.constant dense<0.000000e+00> : vector<4x1xf32>
    %3 = vector.multi_reduction <add>, %2, %cst_2 [0] : vector<2x4x1xf32> to vector<4x1xf32>
    %4 = vector.shape_cast %3 : vector<4x1xf32> to vector<1x4x1xf32>
    %cst_3 = arith.constant 0.001953125 : f32
    %5 = vector.broadcast %cst_3 : f32 to vector<1x4x1xf32>
    %6 = arith.mulf %4, %5 : vector<1x4x1xf32>
    %7 = vector.broadcast %6 : vector<1x4x1xf32> to vector<2x4x256xf32>
    %8 = arith.subf %0, %7 : vector<2x4x256xf32>
    %9 = arith.mulf %8, %8 : vector<2x4x256xf32>
    %cst_4 = arith.constant dense<0.000000e+00> : vector<2x4xf32>
    %10 = vector.multi_reduction <add>, %9, %cst_4 [2] : vector<2x4x256xf32> to vector<2x4xf32>
    %11 = vector.shape_cast %10 : vector<2x4xf32> to vector<2x4x1xf32>
    %cst_5 = arith.constant dense<0.000000e+00> : vector<4x1xf32>
    %12 = vector.multi_reduction <add>, %11, %cst_5 [0] : vector<2x4x1xf32> to vector<4x1xf32>
    %13 = vector.shape_cast %12 : vector<4x1xf32> to vector<1x4x1xf32>
    %cst_6 = arith.constant 0.001953125 : f32
    %14 = vector.broadcast %cst_6 : f32 to vector<1x4x1xf32>
    %15 = arith.mulf %13, %14 : vector<1x4x1xf32>
    %cst_7 = arith.constant 9.99999974E-5 : f32
    %16 = vector.broadcast %cst_7 : f32 to vector<1x4x1xf32>
    %17 = arith.addf %15, %16 : vector<1x4x1xf32>
    %18 = math.rsqrt %17 : vector<1x4x1xf32>
    %c0_8 = arith.constant 0 : index
    %c0_9 = arith.constant 0 : index
    %c0_10 = arith.constant 0 : index
    %19 = vector.load %arg2[%c0_8, %c0_9, %c0_10] : memref<2x4x2xf32, #tpu.memory_space<vmem>>, vector<2x4x2xf32>
    %20 = vector.extract_strided_slice %19 {offsets = [0, 0, 0], sizes = [2, 4, 1], strides = [1, 1, 1]} : vector<2x4x2xf32> to vector<2x4x1xf32>
    %21 = vector.extract_strided_slice %19 {offsets = [0, 0, 1], sizes = [2, 4, 1], strides = [1, 1, 1]} : vector<2x4x2xf32> to vector<2x4x1xf32>
    %22 = vector.broadcast %18 : vector<1x4x1xf32> to vector<2x4x1xf32>
    %23 = arith.mulf %20, %22 : vector<2x4x1xf32>
    %24 = vector.broadcast %23 : vector<2x4x1xf32> to vector<2x4x256xf32>
    %25 = arith.mulf %8, %24 : vector<2x4x256xf32>
    %26 = vector.broadcast %21 : vector<2x4x1xf32> to vector<2x4x256xf32>
    %27 = arith.addf %25, %26 : vector<2x4x256xf32>
    %c0_11 = arith.constant 0 : index
    %c0_12 = arith.constant 0 : index
    %c0_13 = arith.constant 0 : index
    %28 = vector.load %arg3[%c0_11, %c0_12, %c0_13] : memref<2x4x256xf32, #tpu.memory_space<vmem>>, vector<2x4x256xf32>
    tpu.vector_store %arg3[%c0_11, %c0_12, %c0_13], %27 {strides = array<i32>} : memref<2x4x256xf32, #tpu.memory_space<vmem>>, vector<2x4x256xf32>,
    return
  }
  func.func @transform_0(%arg0: i32) -> (i32, i32, i32) {
    %c0_i32 = arith.constant 0 : i32
    %c0_i32_0 = arith.constant 0 : i32
    %c0_i32_1 = arith.constant 0 : i32
    return %c0_i32, %arg0, %c0_i32_0 : i32, i32, i32
  }
  func.func @transform_1(%arg0: i32) -> (i32, i32, i32) {
    %c0_i32 = arith.constant 0 : i32
    %c0_i32_0 = arith.constant 0 : i32
    %c0_i32_1 = arith.constant 0 : i32
    return %c0_i32, %arg0, %c0_i32_0 : i32, i32, i32
  }
  func.func @transform_2(%arg0: i32) -> (i32, i32, i32) {
    %c0_i32 = arith.constant 0 : i32
    %c0_i32_0 = arith.constant 0 : i32
    %c0_i32_1 = arith.constant 0 : i32
    return %c0_i32, %arg0, %c0_i32_0 : i32, i32, i32
  }
}

</mosaic_0001>

<llo_original>
// kernel: conditional_batchnorm2d.1
$region0: #{conditional_batchnorm2d.1}
  #allocation0 [shape = 'u32[]', space=smem, size = 0x4, offset = 0x4, fixed_abs, tag = 'smem constant byte address 0x4 - core index']
  #allocation1 [shape = 'u32[72,128]{1,0:T(1,128)}', space=vmem, size = 0x9000, scoped, tag = 'internal scratch']
  %s0 = inlined_call_operand.vmem [shape: f32[2,4,256], index: 0, kind: input, shape index: {}]
  %s1 = inlined_call_operand.vmem [shape: f32[2,4,2], index: 1, kind: input, shape index: {}]
  %s2 = inlined_call_operand.vmem [shape: f32[2,4,256], index: 2, kind: output, shape index: {}]
  %s3 = sld [smem:[#allocation0]]
  $region18: #{conditional_batchnorm2d.1} parent=0
    _
  %s5 = ssub.s32 1, %s3
  %s6 = scalar_select 0, %s5, %s3
  // Predicated region
  $region2: #{conditional_batchnorm2d.1} parent=0 // pred_check
    _
  $region3: #{conditional_batchnorm2d.1} parent=0 // pred_check_branch
    %8 = sbr.rel (0) target = $region5
  $region4: #{conditional_batchnorm2d.1} parent=0 // pred_region
    _
  $region5: #{conditional_batchnorm2d.1} parent=0 // pred_fallthru
    _
  // Predicated region
  $region6: #{conditional_batchnorm2d.1} parent=0 // pred_check
    _
  $region7: #{conditional_batchnorm2d.1} parent=0 // pred_check_branch
    %10 = sbr.rel (0) target = $region9
  $region8: #{conditional_batchnorm2d.1} parent=0 // pred_region
    _
  $region9: #{conditional_batchnorm2d.1} parent=0 // pred_fallthru
    _
  %v11 = vld [vmem:[%s0] sm:$0xff]
  %v12 = vld [vmem:[%s0 + $0x8] sm:$0xff]
  %15 = vst [vmem:[#allocation1] ss:$2 sm:$0xff] %v11
  %v16 = vld.sshfl [vmem:[#allocation1] sm:$0xff pattern:$0x75316420]
  %v17 = vld.sshfl [vmem:[#allocation1 + $0x8] sm:$0xff pattern:$0x75316420]
  %s18 = scalar_lea.vmem [#allocation1], 16
  %19 = vst [vmem:[%s18] ss:$2 sm:$0xff] %v12
  %v20 = vld.sshfl [vmem:[#allocation1 + $0x10] sm:$0xff pattern:$0x75316420]
  %v21 = vld.sshfl [vmem:[#allocation1 + $0x18] sm:$0xff pattern:$0x75316420]
  %vm26 = vcmask 1043456
  %v27 = vsel %vm26, %v16, 0.0
  %v28 = vsel %vm26, %v17, 0.0
  %v29 = vadd.f32 %v27, %v28
  %30 = vadd.xlane.f32.xlu0 %v29
  %v31 = vpop.xlane.xlu0 %30
  %v32 = vsel %vm26, %v20, 0.0
  %v33 = vsel %vm26, %v21, 0.0
  %v34 = vadd.f32 %v32, %v33
  %35 = vadd.xlane.f32.xlu0 %v34
  %v36 = vpop.xlane.xlu0 %35
  %v37 = vsel %vm26, %v31, 0.0
  %v38 = vsel %vm26, %v36, 0.0
  %v39 = vadd.f32 %v37, %v38
  %v40 = vmul.f32 %v39, 0.001953125
  %v43 = vunpack.c.l.s4 839922192
  %v44 = vunpack.c.0.s8 %v43
  %v45 = vperm.slane %v40, %v44
  %v47 = vsub.f32 %v11, %v45
  %v48 = vsub.f32 %v12, %v45
  %v49 = vmul.f32 %v47, %v47
  %v50 = vmul.f32 %v48, %v48
  %53 = vst [vmem:[#allocation1] ss:$2 sm:$0xff] %v49
  %v54 = vld.sshfl [vmem:[#allocation1] sm:$0xff pattern:$0x75316420]
  %v55 = vld.sshfl [vmem:[#allocation1 + $0x8] sm:$0xff pattern:$0x75316420]
  %s56 = scalar_lea.vmem [#allocation1], 16
  %57 = vst [vmem:[%s56] ss:$2 sm:$0xff] %v50
  %v58 = vld.sshfl [vmem:[#allocation1 + $0x10] sm:$0xff pattern:$0x75316420]
  %v59 = vld.sshfl [vmem:[#allocation1 + $0x18] sm:$0xff pattern:$0x75316420]
  %v64 = vsel %vm26, %v54, 0.0
  %v65 = vsel %vm26, %v55, 0.0
  %v66 = vadd.f32 %v64, %v65
  %67 = vadd.xlane.f32.xlu0 %v66
  %v68 = vpop.xlane.xlu0 %67
  %v69 = vsel %vm26, %v58, 0.0
  %v70 = vsel %vm26, %v59, 0.0
  %v71 = vadd.f32 %v69, %v70
  %72 = vadd.xlane.f32.xlu0 %v71
  %v73 = vpop.xlane.xlu0 %72
  %v74 = vsel %vm26, %v68, 0.0
  %v75 = vsel %vm26, %v73, 0.0
  %v76 = vadd.f32 %v74, %v75
  %v77 = vmul.f32 %v76, 0.001953125
  %v78 = vadd.f32 %v77, 0.0001
  %v79 = vrsqrt.pop %v78
  %v80 = vmul.f32 %v79, %v78
  %v81 = vmul.f32 %v80, %v79
  %v82 = vmul.f32 0.5, %v81
  %v83 = vsub.f32 1.5, %v82
  %v84 = vmul.f32 %v79, %v83
  %vm85 = vweird.f32 %v78
  %vm86 = vweird.f32 %v79
  %vm87 = vmor %vm85, %vm86
  %v88 = vsel %vm87, %v79, %v84
  %v89 = vld [vmem:[%s1] sm:$0xf]
  %v90 = vld [vmem:[%s1 + $0x4] sm:$0xf]
  %v91 = vmul.f32 %v89, %v88
  %v92 = vmul.f32 %v90, %v88
  %94 = vset.pattern.permute.xlu0 0
  %95 = vperm.xlu0 %94, %v91
  %v96 = vpop.permute.xlu0 %95
  %98 = vset.pattern.permute.xlu0 0
  %99 = vperm.xlu0 %98, %v92
  %v100 = vpop.permute.xlu0 %99
  %v102 = vunpack.c.l.s4 839922192
  %v103 = vunpack.c.0.s8 %v102
  %v104 = vperm.slane %v96, %v103
  %v106 = vunpack.c.l.s4 839922192
  %v107 = vunpack.c.0.s8 %v106
  %v108 = vperm.slane %v100, %v107
  %v111 = vmul.f32 %v47, %v104
  %v112 = vmul.f32 %v48, %v108
  %114 = vset.pattern.permute.xlu0 1
  %115 = vperm.xlu0 %114, %v89
  %v116 = vpop.permute.xlu0 %115
  %118 = vset.pattern.permute.xlu0 1
  %119 = vperm.xlu0 %118, %v90
  %v120 = vpop.permute.xlu0 %119
  %v122 = vunpack.c.l.s4 839922192
  %v123 = vunpack.c.0.s8 %v122
  %v124 = vperm.slane %v116, %v123
  %v126 = vunpack.c.l.s4 839922192
  %v127 = vunpack.c.0.s8 %v126
  %v128 = vperm.slane %v120, %v127
  %v131 = vadd.f32 %v111, %v124
  %v132 = vadd.f32 %v112, %v128
  %133 = vst [vmem:[%s2] sm:$0xff] %v131
  %134 = vst [vmem:[%s2 + $0x8] sm:$0xff] %v132
  // Predicated region
  $region10: #{conditional_batchnorm2d.1} parent=0 // pred_check
    _
  $region11: #{conditional_batchnorm2d.1} parent=0 // pred_check_branch
    %136 = sbr.rel (0) target = $region13
  $region12: #{conditional_batchnorm2d.1} parent=0 // pred_region
    _
  $region13: #{conditional_batchnorm2d.1} parent=0 // pred_fallthru
    _
  // Predicated region
  $region14: #{conditional_batchnorm2d.1} parent=0 // pred_check
    _
  $region15: #{conditional_batchnorm2d.1} parent=0 // pred_check_branch
    %138 = sbr.rel (0) target = $region17
  $region16: #{conditional_batchnorm2d.1} parent=0 // pred_region
    _
  $region17: #{conditional_batchnorm2d.1} parent=0 // pred_fallthru
    _

</llo_original>
